<compile_context>
chip_gen: v5e
topology: v5e:2x2
jax: 0.10.0
libtpu: 0.0.40
codegen_flags: <defaults>
</compile_context>

<pallas_src>
import math

import jax
import jax.numpy as jnp
from jax.experimental import pallas as pl
from jax.experimental.pallas import tpu as pltpu


def _cdiv(a, b):
    return -(-a // b)


def _round_up(n, m):
    return ((n + m - 1) // m) * m


def _dqn_kernel(x_ref, w1_ref, b1_ref, w2_ref, b2_ref, w3_ref, b3_ref, o_ref):
    # Cast the x tile to the dot-operand dtype in-kernel (rides a free VPU slot;
    # avoids a standalone wrapper-side cast pass over x in HBM).
    x = x_ref[...].astype(w1_ref.dtype)
    # layer1 + ReLU (MXU matmul, f32 accumulation; bias/ReLU in f32)
    h1 = jnp.dot(x, w1_ref[...], preferred_element_type=jnp.float32)
    h1 = jnp.maximum(h1 + b1_ref[...], 0.0)
    # layer2 + ReLU
    h2 = jnp.dot(h1.astype(w2_ref.dtype), w2_ref[...],
                 preferred_element_type=jnp.float32)
    h2 = jnp.maximum(h2 + b2_ref[...], 0.0)
    # layer3 (no activation); narrow (n_actions) store is a masked vst — cheaper
    # than the 32x-amplified 128-lane padded writeback it replaces.
    out = jnp.dot(h2.astype(w3_ref.dtype), w3_ref[...],
                  preferred_element_type=jnp.float32)
    o_ref[...] = (out + b3_ref[...]).astype(o_ref.dtype)


def dqn_forward(x, params, *, compute_dtype=jnp.bfloat16, batch_tile=512,
                core_parallel=False, x_buffer_count=2):
    """x: (B, n_observations). params: dict of transposed weights/biases.

    compute_dtype: dtype of the dot operands (default bfloat16; MXU-native).
                   Accumulation / bias / ReLU / output are always f32.
    batch_tile:    max rows per grid step (multiple of 8 enforced). 512 is a
                   good default; cap here keeps vreg pressure bounded.
    core_parallel: use pltpu.CORE_PARALLEL on the batch axis (v7x, 2 TCs).
    x_buffer_count: pipeline depth for the x spec (>2 uses pl.Buffered).
    """
    w1, b1, w2, b2, w3, b3 = (
        params["w1"], params["b1"], params["w2"],
        params["b2"], params["w3"], params["b3"],
    )
    B, n_obs = x.shape
    hidden = w1.shape[1]
    n_actions = w3.shape[1]

    # --- resident weights: cast dot operands ONCE outside the kernel ---
    cd = compute_dtype
    w1c, w2c, w3c = w1.astype(cd), w2.astype(cd), w3.astype(cd)
    b1f, b2f, b3f = (b1.astype(jnp.float32), b2.astype(jnp.float32),
                     b3.astype(jnp.float32))

    # --- batch tiling: TB multiple of 8, last tile carries <= 7 padded rows ---
    num_tiles = max(1, _cdiv(B, batch_tile))
    TB = _round_up(_cdiv(B, num_tiles), 8)
    B_pad = TB * num_tiles
    if B_pad != B:
        x = jnp.pad(x, ((0, B_pad - B), (0, 0)))
    grid = (num_tiles,)

    # Weights/biases: full block, same block index every step -> VMEM-resident.
    resident = lambda a: pl.BlockSpec(a.shape, lambda i: (0, 0))

    x_spec_kwargs = {}
    if x_buffer_count > 2:
        x_spec_kwargs["pipeline_mode"] = pl.Buffered(x_buffer_count)
    x_spec = pl.BlockSpec((TB, n_obs), lambda i: (i, 0), **x_spec_kwargs)

    # Advisory cost estimate (helps XLA schedule this tiny custom call).
    flops = 2 * B_pad * (n_obs * hidden + hidden * hidden + hidden * n_actions)
    bytes_accessed = (
        B_pad * n_obs * x.dtype.itemsize
        + (w1c.size + w2c.size + w3c.size) * jnp.dtype(cd).itemsize
        + (b1f.size + b2f.size + b3f.size) * 4
        + B_pad * n_actions * 4
    )
    cost = pl.CostEstimate(flops=flops, transcendentals=0,
                           bytes_accessed=bytes_accessed)

    sem = (pltpu.CORE_PARALLEL,) if core_parallel else ("parallel",)

    out = pl.pallas_call(
        _dqn_kernel,
        out_shape=jax.ShapeDtypeStruct((B_pad, n_actions), jnp.float32),
        grid=grid,
        in_specs=[
            x_spec,                               # x: tiled over batch
            resident(w1c), resident(b1f),
            resident(w2c), resident(b2f),
            resident(w3c), resident(b3f),
        ],
        out_specs=pl.BlockSpec((TB, n_actions), lambda i: (i, 0)),
        compiler_params=pltpu.CompilerParams(dimension_semantics=sem),
        cost_estimate=cost,
    )(x, w1c, b1f, w2c, b2f, w3c, b3f)

    # Only the (small) row padding is sliced away; no column slice needed.
    return out if B_pad == B else out[:B]


def init_dqn_params(key, n_observations, n_actions, hidden=64):
    """PyTorch nn.Linear default init (uniform +/- 1/sqrt(fan_in)).
    Weights stored transposed: (in_features, out_features)."""
    keys = jax.random.split(key, 6)

    def linear(kw, kb, fan_in, fan_out):
        bound = 1.0 / math.sqrt(fan_in)
        w = jax.random.uniform(kw, (fan_in, fan_out), jnp.float32, -bound, bound)
        b = jax.random.uniform(kb, (1, fan_out), jnp.float32, -bound, bound)
        return w, b

    w1, b1 = linear(keys[0], keys[1], n_observations, hidden)
    w2, b2 = linear(keys[2], keys[3], hidden, hidden)
    w3, b3 = linear(keys[4], keys[5], hidden, n_actions)
    return dict(w1=w1, b1=b1, w2=w2, b2=b2, w3=w3, b3=b3)


def dqn_reference(x, params):
    """Pure-JAX reference matching the PyTorch forward exactly."""
    h = jnp.maximum(x @ params["w1"] + params["b1"], 0.0)
    h = jnp.maximum(h @ params["w2"] + params["b2"], 0.0)
    return h @ params["w3"] + params["b3"]


if __name__ == "__main__":
    key = jax.random.PRNGKey(0)
    k_param, k_x, k_x2 = jax.random.split(key, 3)

    n_observations = 8
    n_actions = 4
    params = init_dqn_params(k_param, n_observations, n_actions)

    # jit the whole wrapper so pad / slice fuse with the pallas-call dispatch.
    fwd_bf16 = jax.jit(lambda xx: dqn_forward(xx, params))
    fwd_f32 = jax.jit(lambda xx: dqn_forward(xx, params,
                                             compute_dtype=jnp.float32))

    # Default (bf16 operands, f32 accumulation) — loose tolerance.
    batch = 32
    x = jax.random.normal(k_x, (batch, n_observations), dtype=jnp.float32)
    ref = dqn_reference(x, params)
    out = fwd_bf16(x)
    jax.block_until_ready(out)
    assert out.shape == (batch, n_actions)
    assert jnp.allclose(out, ref, atol=1e-1, rtol=1e-1)

    # f32 operand path — exact match vs reference.
    out32 = fwd_f32(x)
    jax.block_until_ready(out32)
    assert jnp.allclose(out32, ref, atol=1e-5, rtol=1e-5)

    # Ragged batch -> multi-step grid with minimal (<=7 row) padding.
    batch2 = 20
    x2 = jax.random.normal(k_x2, (batch2, n_observations), dtype=jnp.float32)
    out2 = jax.jit(lambda xx: dqn_forward(xx, params,
                                          compute_dtype=jnp.float32,
                                          batch_tile=8))(x2)
    jax.block_until_ready(out2)
    ref2 = dqn_reference(x2, params)
    assert out2.shape == (batch2, n_actions)
    assert jnp.allclose(out2, ref2, atol=1e-5, rtol=1e-5)

    # v7x: shard grid steps across the 2 TensorCores; fall back silently on
    # single-TensorCore generations (v5e/v6e) if rejected.
    try:
        out_cp = jax.jit(lambda xx: dqn_forward(xx, params,
                                                core_parallel=True))(x)
        jax.block_until_ready(out_cp)
        assert jnp.allclose(out_cp, ref, atol=1e-1, rtol=1e-1)
    except Exception:
        pass  # TODO(synk): CORE_PARALLEL not supported on this chip generation.

    print("KERNEL_OK")
</pallas_src>

<mosaic_0001>
module attributes {stable_mosaic.version = 11 : i64} {
  func.func @_dqn_kernel(%arg0: i32, %arg1: memref<32x8xf32, #tpu.memory_space<vmem>>, %arg2: memref<8x64xbf16, #tpu.memory_space<vmem>>, %arg3: memref<1x64xf32, #tpu.memory_space<vmem>>, %arg4: memref<64x64xbf16, #tpu.memory_space<vmem>>, %arg5: memref<1x64xf32, #tpu.memory_space<vmem>>, %arg6: memref<64x4xbf16, #tpu.memory_space<vmem>>, %arg7: memref<1x4xf32, #tpu.memory_space<vmem>>, %arg8: memref<32x4xf32, #tpu.memory_space<vmem>>) attributes {dimension_semantics = [#tpu.dimension_semantics<parallel>], iteration_bounds = array<i64: 1>, scalar_prefetch = 0 : i64, scratch_operands = 0 : i64, tpu.core_type = #tpu.core_type<tc>, window_params = [{transform_indices = @transform_0, window_bounds = array<i64: 32, 8>}, {pipeline_mode = #tpu.pipeline_mode<synchronous>, transform_indices = @transform_1, window_bounds = array<i64: 8, 64>}, {pipeline_mode = #tpu.pipeline_mode<synchronous>, transform_indices = @transform_2, window_bounds = array<i64: 1, 64>}, {pipeline_mode = #tpu.pipeline_mode<synchronous>, transform_indices = @transform_3, window_bounds = array<i64: 64, 64>}, {pipeline_mode = #tpu.pipeline_mode<synchronous>, transform_indices = @transform_4, window_bounds = array<i64: 1, 64>}, {pipeline_mode = #tpu.pipeline_mode<synchronous>, transform_indices = @transform_5, window_bounds = array<i64: 64, 4>}, {pipeline_mode = #tpu.pipeline_mode<synchronous>, transform_indices = @transform_6, window_bounds = array<i64: 1, 4>}, {transform_indices = @transform_7, window_bounds = array<i64: 32, 4>}]} {
    %c0 = arith.constant 0 : index
    %c0_0 = arith.constant 0 : index
    %0 = vector.load %arg1[%c0, %c0_0] : memref<32x8xf32, #tpu.memory_space<vmem>>, vector<32x8xf32>
    %1 = arith.truncf %0 : vector<32x8xf32> to vector<32x8xbf16>
    %c0_1 = arith.constant 0 : index
    %c0_2 = arith.constant 0 : index
    %2 = vector.load %arg2[%c0_1, %c0_2] : memref<8x64xbf16, #tpu.memory_space<vmem>>, vector<8x64xbf16>
    %cst = arith.constant dense<0.000000e+00> : vector<32x64xf32>
    %3 = tpu.matmul %1, %2, %cst {dimension_numbers = #tpu.dot_dimension_numbers<[1], [0], [0], [1], [0, 0, 1, 1], [], []>} : vector<32x8xbf16>, vector<8x64xbf16>, vector<32x64xf32> -> vector<32x64xf32>
    %c0_3 = arith.constant 0 : index
    %c0_4 = arith.constant 0 : index
    %4 = vector.load %arg3[%c0_3, %c0_4] : memref<1x64xf32, #tpu.memory_space<vmem>>, vector<1x64xf32>
    %5 = vector.broadcast %4 : vector<1x64xf32> to vector<32x64xf32>
    %6 = arith.addf %3, %5 : vector<32x64xf32>
    %cst_5 = arith.constant 0.000000e+00 : f32
    %7 = vector.broadcast %cst_5 : f32 to vector<32x64xf32>
    %8 = arith.maximumf %6, %7 : vector<32x64xf32>
    %9 = arith.truncf %8 : vector<32x64xf32> to vector<32x64xbf16>
    %c0_6 = arith.constant 0 : index
    %c0_7 = arith.constant 0 : index
    %10 = vector.load %arg4[%c0_6, %c0_7] : memref<64x64xbf16, #tpu.memory_space<vmem>>, vector<64x64xbf16>
    %cst_8 = arith.constant dense<0.000000e+00> : vector<32x64xf32>
    %11 = tpu.matmul %9, %10, %cst_8 {dimension_numbers = #tpu.dot_dimension_numbers<[1], [0], [0], [1], [0, 0, 1, 1], [], []>} : vector<32x64xbf16>, vector<64x64xbf16>, vector<32x64xf32> -> vector<32x64xf32>
    %c0_9 = arith.constant 0 : index
    %c0_10 = arith.constant 0 : index
    %12 = vector.load %arg5[%c0_9, %c0_10] : memref<1x64xf32, #tpu.memory_space<vmem>>, vector<1x64xf32>
    %13 = vector.broadcast %12 : vector<1x64xf32> to vector<32x64xf32>
    %14 = arith.addf %11, %13 : vector<32x64xf32>
    %cst_11 = arith.constant 0.000000e+00 : f32
    %15 = vector.broadcast %cst_11 : f32 to vector<32x64xf32>
    %16 = arith.maximumf %14, %15 : vector<32x64xf32>
    %17 = arith.truncf %16 : vector<32x64xf32> to vector<32x64xbf16>
    %c0_12 = arith.constant 0 : index
    %c0_13 = arith.constant 0 : index
    %18 = vector.load %arg6[%c0_12, %c0_13] : memref<64x4xbf16, #tpu.memory_space<vmem>>, vector<64x4xbf16>
    %cst_14 = arith.constant dense<0.000000e+00> : vector<32x4xf32>
    %19 = tpu.matmul %17, %18, %cst_14 {dimension_numbers = #tpu.dot_dimension_numbers<[1], [0], [0], [1], [0, 0, 1, 1], [], []>} : vector<32x64xbf16>, vector<64x4xbf16>, vector<32x4xf32> -> vector<32x4xf32>
    %c0_15 = arith.constant 0 : index
    %c0_16 = arith.constant 0 : index
    %20 = vector.load %arg7[%c0_15, %c0_16] : memref<1x4xf32, #tpu.memory_space<vmem>>, vector<1x4xf32>
    %21 = vector.broadcast %20 : vector<1x4xf32> to vector<32x4xf32>
    %22 = arith.addf %19, %21 : vector<32x4xf32>
    %c0_17 = arith.constant 0 : index
    %c0_18 = arith.constant 0 : index
    %23 = vector.load %arg8[%c0_17, %c0_18] : memref<32x4xf32, #tpu.memory_space<vmem>>, vector<32x4xf32>
    tpu.vector_store %arg8[%c0_17, %c0_18], %22 {strides = array<i32>} : memref<32x4xf32, #tpu.memory_space<vmem>>, vector<32x4xf32>,
    return
  }
  func.func @transform_0(%arg0: i32) -> (i32, i32) {
    %c0_i32 = arith.constant 0 : i32
    %c0_i32_0 = arith.constant 0 : i32
    return %arg0, %c0_i32 : i32, i32
  }
  func.func @transform_1(%arg0: i32) -> (i32, i32) {
    %c0_i32 = arith.constant 0 : i32
    %c0_i32_0 = arith.constant 0 : i32
    %c0_i32_1 = arith.constant 0 : i32
    return %c0_i32, %c0_i32_0 : i32, i32
  }
  func.func @transform_2(%arg0: i32) -> (i32, i32) {
    %c0_i32 = arith.constant 0 : i32
    %c0_i32_0 = arith.constant 0 : i32
    %c0_i32_1 = arith.constant 0 : i32
    return %c0_i32, %c0_i32_0 : i32, i32
  }
  func.func @transform_3(%arg0: i32) -> (i32, i32) {
    %c0_i32 = arith.constant 0 : i32
    %c0_i32_0 = arith.constant 0 : i32
    %c0_i32_1 = arith.constant 0 : i32
    return %c0_i32, %c0_i32_0 : i32, i32
  }
  func.func @transform_4(%arg0: i32) -> (i32, i32) {
    %c0_i32 = arith.constant 0 : i32
    %c0_i32_0 = arith.constant 0 : i32
    %c0_i32_1 = arith.constant 0 : i32
    return %c0_i32, %c0_i32_0 : i32, i32
  }
  func.func @transform_5(%arg0: i32) -> (i32, i32) {
    %c0_i32 = arith.constant 0 : i32
    %c0_i32_0 = arith.constant 0 : i32
    %c0_i32_1 = arith.constant 0 : i32
    return %c0_i32, %c0_i32_0 : i32, i32
  }
  func.func @transform_6(%arg0: i32) -> (i32, i32) {
    %c0_i32 = arith.constant 0 : i32
    %c0_i32_0 = arith.constant 0 : i32
    %c0_i32_1 = arith.constant 0 : i32
    return %c0_i32, %c0_i32_0 : i32, i32
  }
  func.func @transform_7(%arg0: i32) -> (i32, i32) {
    %c0_i32 = arith.constant 0 : i32
    %c0_i32_0 = arith.constant 0 : i32
    return %arg0, %c0_i32 : i32, i32
  }
}

</mosaic_0001>

<llo_original>
// kernel: _lambda_.1
$region0: #{_lambda_.1}
  #allocation0 [shape = 'u32[]', space=smem, size = 0x4, offset = 0x4, fixed_abs, tag = 'smem constant byte address 0x4 - core index']
  #allocation1 [shape = 'u32[72,128]{1,0:T(1,128)}', space=vmem, size = 0x9000, scoped, tag = 'internal scratch']
  %s0 = inlined_call_operand.vmem [shape: f32[32,8], index: 0, kind: input, shape index: {}]
  %s1 = inlined_call_operand.vmem [shape: bf16[8,64], index: 1, kind: input, shape index: {}]
  %s2 = inlined_call_operand.vmem [shape: f32[1,64], index: 2, kind: input, shape index: {}]
  %s3 = inlined_call_operand.hbm [shape: bf16[64,64], index: 3, kind: input, shape index: {}]
  %s4 = inlined_call_operand.vmem [shape: f32[1,64], index: 4, kind: input, shape index: {}]
  %s5 = inlined_call_operand.vmem [shape: bf16[64,4], index: 5, kind: input, shape index: {}]
  %s6 = inlined_call_operand.vmem [shape: f32[1,4], index: 6, kind: input, shape index: {}]
  %s7 = inlined_call_operand.vmem [shape: f32[32,4], index: 7, kind: output, shape index: {}]
  %s8 = sld [smem:[#allocation0]]
  $region42: #{_lambda_.1} parent=0
    _
  %s10 = ssub.s32 1, %s8
  %s11 = scalar_select 0, %s10, %s8
  $region1: #{_lambda_.1} parent=0
    #allocation2 [shape = 'u8[16384]{0}', space=vmem, size = 0x4000, scoped, tag = 'input window, operand 3, single buffered']
    #allocation3 [shape = 's32[1]{0}', space=sflag, size = 0x4, scoped, tag = 'scoped memory for _lambda_.1']
    %12 = vsyncpa [#allocation3], 0
    // Predicated region
    $region2: #{_lambda_.1} parent=1 // pred_check
      _
    $region3: #{_lambda_.1} parent=1 // pred_check_branch
      %14 = sbr.rel (0) target = $region5
    $region4: #{_lambda_.1} parent=1 // pred_region
      _
    $region5: #{_lambda_.1} parent=1 // pred_fallthru
      _
    // Predicated region
    $region6: #{_lambda_.1} parent=1 // pred_check
      _
    $region7: #{_lambda_.1} parent=1 // pred_check_branch
      %16 = sbr.rel (0) target = $region9
    $region8: #{_lambda_.1} parent=1 // pred_region
      _
    $region9: #{_lambda_.1} parent=1 // pred_fallthru
      _
    // Predicated region
    $region10: #{_lambda_.1} parent=1 // pred_check
      _
    $region11: #{_lambda_.1} parent=1 // pred_check_branch
      %18 = sbr.rel (0) target = $region13
    $region12: #{_lambda_.1} parent=1 // pred_region
      _
    $region13: #{_lambda_.1} parent=1 // pred_fallthru
      _
    // Predicated region
    $region14: #{_lambda_.1} parent=1 // pred_check
      _
    $region15: #{_lambda_.1} parent=1 // pred_check_branch
      %20 = sbr.rel (0) target = $region17
    $region16: #{_lambda_.1} parent=1 // pred_region
      %22 = vsyncadd [#allocation3], 0
      %s23 = sshll.u32 %s3, 4
      %s24 = int_to_ptr.hbm [resolvable:$true] %s23
      %s25 = sshll.u32 [#allocation2], 4
      %s26 = int_to_ptr.vmem [resolvable:$true] %s25
      %31 = dma.hbm_to_vmem [thread:$0]  %s24, 512, %s26, [#allocation3], 64, 64, 4
    $region17: #{_lambda_.1} parent=1 // pred_fallthru
      _
    // Predicated region
    $region18: #{_lambda_.1} parent=1 // pred_check
      _
    $region19: #{_lambda_.1} parent=1 // pred_check_branch
      %33 = sbr.rel (0) target = $region21
    $region20: #{_lambda_.1} parent=1 // pred_region
      _
    $region21: #{_lambda_.1} parent=1 // pred_fallthru
      _
    // Predicated region
    $region22: #{_lambda_.1} parent=1 // pred_check
      _
    $region23: #{_lambda_.1} parent=1 // pred_check_branch
      %35 = sbr.rel (0) target = $region25
    $region24: #{_lambda_.1} parent=1 // pred_region
      _
    $region25: #{_lambda_.1} parent=1 // pred_fallthru
      _
    // Predicated region
    $region26: #{_lambda_.1} parent=1 // pred_check
      _
    $region27: #{_lambda_.1} parent=1 // pred_check_branch
      %37 = sbr.rel (0) target = $region29
    $region28: #{_lambda_.1} parent=1 // pred_region
      _
    $region29: #{_lambda_.1} parent=1 // pred_fallthru
      _
    // Predicated region
    $region30: #{_lambda_.1} parent=1 // pred_check
      _
    $region31: #{_lambda_.1} parent=1 // pred_check_branch
      %39 = sbr.rel (0) target = $region33
    $region32: #{_lambda_.1} parent=1 // pred_region
      %41 = dma.done [#allocation3], 512
    $region33: #{_lambda_.1} parent=1 // pred_fallthru
      _
    %v43 = vld [vmem:[%s0] sm:$0xff]
    %v44 = vld [vmem:[%s0 + $0x8] sm:$0xff]
    %v45 = vld [vmem:[%s0 + $0x10] sm:$0xff]
    %v46 = vld [vmem:[%s0 + $0x18] sm:$0xff]
    %v47 = vpack.c.bf16 %v44, %v43
    %v48 = vpack.c.bf16 %v46, %v45
    %v49 = vld [vmem:[%s1] sm:$0xf]
    %v50 = vld [vmem:[%s2] sm:$0x1]
    %v52 = vperm.slane %v50, 0
    %vm54 = vcmask 64512
    %v56 = vsel %vm54, %v47, 0
    %v59 = vsel %vm54, %v48, 0
    %vm61 = vcmask 1043456
    %v63 = vsel %vm61, %v49, 0
    %65 = vmatpush.bf16.msra.mxu0 0
    %66 = vmatpush.bf16.msra.mxu0 0
    %67 = vmatpush.bf16.msra.mxu0 0
    %68 = vmatpush.bf16.msra.mxu0 0
    %69 = vmatpush.bf16.msra.mxu0 0
    %70 = vmatpush.bf16.msra.mxu0 0
    %71 = vmatpush.bf16.msra.mxu0 0
    %72 = vmatpush.bf16.msra.mxu0 %v63
    %73 = vmatmul.bf16.gmra.mxu0 %v56
    %v74 = vpop.f32.mrf.mxu0
    %v75 = vadd.f32 %v52, %v74
    %v76 = vpop.f32.mrf.mxu0
    %v77 = vadd.f32 %v52, %v76
    %78 = vmatmul.bf16.gmra.mxu0 %v59
    %v79 = vpop.f32.mrf.mxu0
    %v80 = vadd.f32 %v52, %v79
    %v81 = vpop.f32.mrf.mxu0
    %v82 = vadd.f32 %v52, %v81
    %83 = vdwg.mxu0
    %v84 = vmax.f32 %v75, 0.0
    %v85 = vmax.f32 %v77, 0.0
    %v86 = vmax.f32 %v80, 0.0
    %v87 = vmax.f32 %v82, 0.0
    %v88 = vpack.c.bf16 %v85, %v84
    %v89 = vpack.c.bf16 %v87, %v86
    %v90 = vld [vmem:[#allocation2] sm:$0xf]
    %v91 = vld [vmem:[#allocation2 + $0x4] sm:$0xf]
    %v92 = vld [vmem:[#allocation2 + $0x8] sm:$0xf]
    %v93 = vld [vmem:[#allocation2 + $0xc] sm:$0xf]
    %v94 = vld [vmem:[#allocation2 + $0x10] sm:$0xf]
    %v95 = vld [vmem:[#allocation2 + $0x14] sm:$0xf]
    %v96 = vld [vmem:[#allocation2 + $0x18] sm:$0xf]
    %v97 = vld [vmem:[#allocation2 + $0x1c] sm:$0xf]
    %v98 = vld [vmem:[%s4] sm:$0x1]
    %v100 = vperm.slane %v98, 0
    %v110 = vunpack.c.l.b16 %v90
    %v111 = vunpack.c.l.b16 %v91
    %v112 = vunpack.c.l.b16 %v92
    %v113 = vunpack.c.l.b16 %v93
    %v114 = vunpack.c.l.b16 %v94
    %v115 = vunpack.c.l.b16 %v95
    %v116 = vunpack.c.l.b16 %v96
    %v117 = vunpack.c.l.b16 %v97
    %v118 = vpack.c.b16 %v111, %v110
    %v119 = vpack.c.b16 %v113, %v112
    %v120 = vpack.c.b16 %v115, %v114
    %v121 = vpack.c.b16 %v117, %v116
    %vm126 = vcmask 523264
    %v128 = vsel %vm126, %v88, 0
    %v131 = vsel %vm126, %v89, 0
    %133 = vmatpush.bf16.msra.mxu0 0
    %134 = vmatpush.bf16.msra.mxu0 0
    %135 = vmatpush.bf16.msra.mxu0 0
    %136 = vmatpush.bf16.msra.mxu0 0
    %137 = vmatpush.bf16.msra.mxu0 %v121
    %138 = vmatpush.bf16.msra.mxu0 %v120
    %139 = vmatpush.bf16.msra.mxu0 %v119
    %140 = vmatpush.bf16.msra.mxu0 %v118
    %141 = vmatmul.bf16.gmra.mxu0 %v128
    %v142 = vpop.f32.mrf.mxu0
    %v143 = vadd.f32 %v100, %v142
    %v144 = vpop.f32.mrf.mxu0
    %v145 = vadd.f32 %v100, %v144
    %146 = vmatmul.bf16.gmra.mxu0 %v131
    %v147 = vpop.f32.mrf.mxu0
    %v148 = vadd.f32 %v100, %v147
    %v149 = vpop.f32.mrf.mxu0
    %v150 = vadd.f32 %v100, %v149
    %151 = vdwg.mxu0
    %v152 = vmax.f32 %v143, 0.0
    %v153 = vmax.f32 %v145, 0.0
    %v154 = vmax.f32 %v148, 0.0
    %v155 = vmax.f32 %v150, 0.0
    %v156 = vpack.c.bf16 %v153, %v152
    %v157 = vpack.c.bf16 %v155, %v154
    %v158 = vld [vmem:[%s5] sm:$0xf]
    %v159 = vld [vmem:[%s5 + $0x4] sm:$0xf]
    %v160 = vld [vmem:[%s5 + $0x8] sm:$0xf]
    %v161 = vld [vmem:[%s5 + $0xc] sm:$0xf]
    %v162 = vld [vmem:[%s5 + $0x10] sm:$0xf]
    %v163 = vld [vmem:[%s5 + $0x14] sm:$0xf]
    %v164 = vld [vmem:[%s5 + $0x18] sm:$0xf]
    %v165 = vld [vmem:[%s5 + $0x1c] sm:$0xf]
    %v166 = vld [vmem:[%s6] sm:$0x1]
    %v168 = vperm.slane %v166, 0
    %v178 = vunpack.c.l.b16 %v158
    %v179 = vunpack.c.l.b16 %v159
    %v180 = vunpack.c.l.b16 %v160
    %v181 = vunpack.c.l.b16 %v161
    %v182 = vunpack.c.l.b16 %v162
    %v183 = vunpack.c.l.b16 %v163
    %v184 = vunpack.c.l.b16 %v164
    %v185 = vunpack.c.l.b16 %v165
    %v186 = vpack.c.b16 %v179, %v178
    %v187 = vpack.c.b16 %v181, %v180
    %v188 = vpack.c.b16 %v183, %v182
    %v189 = vpack.c.b16 %v185, %v184
    %v195 = vsel %vm126, %v156, 0
    %v198 = vsel %vm126, %v157, 0
    %200 = vmatpush.bf16.msra.mxu0 0
    %201 = vmatpush.bf16.msra.mxu0 0
    %202 = vmatpush.bf16.msra.mxu0 0
    %203 = vmatpush.bf16.msra.mxu0 0
    %204 = vmatpush.bf16.msra.mxu0 %v189
    %205 = vmatpush.bf16.msra.mxu0 %v188
    %206 = vmatpush.bf16.msra.mxu0 %v187
    %207 = vmatpush.bf16.msra.mxu0 %v186
    %208 = vmatmul.bf16.gmra.mxu0 %v195
    %v209 = vpop.f32.mrf.mxu0
    %v210 = vadd.f32 %v168, %v209
    %v211 = vpop.f32.mrf.mxu0
    %v212 = vadd.f32 %v168, %v211
    %213 = vmatmul.bf16.gmra.mxu0 %v198
    %v214 = vpop.f32.mrf.mxu0
    %v215 = vadd.f32 %v168, %v214
    %v216 = vpop.f32.mrf.mxu0
    %v217 = vadd.f32 %v168, %v216
    %218 = vdwg.mxu0
    %vm219 = vcmask 31744
    %220 = vst.msk [vmem:[%s7] sm:$0xff] %vm219, %v210
    %221 = vst.msk [vmem:[%s7 + $0x8] sm:$0xff] %vm219, %v212
    %222 = vst.msk [vmem:[%s7 + $0x10] sm:$0xff] %vm219, %v215
    %223 = vst.msk [vmem:[%s7 + $0x18] sm:$0xff] %vm219, %v217
    // Predicated region
    $region34: #{_lambda_.1} parent=1 // pred_check
      _
    $region35: #{_lambda_.1} parent=1 // pred_check_branch
      %225 = sbr.rel (0) target = $region37
    $region36: #{_lambda_.1} parent=1 // pred_region
      _
    $region37: #{_lambda_.1} parent=1 // pred_fallthru
      _
    // Predicated region
    $region38: #{_lambda_.1} parent=1 // pred_check
      _
    $region39: #{_lambda_.1} parent=1 // pred_check_branch
      %227 = sbr.rel (0) target = $region41
    $region40: #{_lambda_.1} parent=1 // pred_region
      _
    $region41: #{_lambda_.1} parent=1 // pred_fallthru
      _
    %228 = vsyncpa [#allocation3], 1

</llo_original>
